<compile_context>
chip_gen: v5e
topology: v5e:2x2
jax: 0.10.0
libtpu: 0.0.40
codegen_flags: <defaults>
</compile_context>

<pallas_src>
import functools

import jax
import jax.numpy as jnp
from jax import lax
from jax.experimental import pallas as pl
from jax.experimental.pallas import tpu as pltpu

LANES = 128
SUBLANES = 8
MAX_TILE_R = 2048          # 2048 x 128 x 4B = 1 MiB per f32 input block
NUM_CORE_SPLITS = 2        # leading "parallel" grid axis (2 TCs on v7x)


def _charbonnier_kernel(n_ref, x_ref, y_ref, acc_ref, *, eps2, tile_r, steps_per_core):
    """Accumulates sum(sqrt((x-y)^2 + eps^2)) over valid elements into acc_ref.

    acc_ref is a per-core (8, 128) f32 block that stays resident across the inner
    ("arbitrary") grid axis; the final cross-lane reduction is done in JAX glue.
    """
    c = pl.program_id(0)            # core-split index ("parallel")
    i = pl.program_id(1)            # reduction step   ("arbitrary")

    @pl.when(i == 0)
    def _():
        acc_ref[...] = jnp.zeros_like(acc_ref)

    n = n_ref[0]                                   # number of real (unpadded) elements
    block_elems = tile_r * LANES
    logical_block = c * steps_per_core + i         # un-clamped logical block id
    base = logical_block * block_elems             # flat index of this block's first elem
    block_end = base + block_elems

    # Upcast on the vreg (free on the VPU) so bf16/fp16 inputs stay narrow over HBM->VMEM.
    d = x_ref[...].astype(jnp.float32) - y_ref[...].astype(jnp.float32)
    v = jnp.sqrt(d * d + jnp.float32(eps2))        # (tile_r, LANES); eps^2 hoisted (Python const)

    def accumulate(vals):
        # (tile_r, 128) -> (tile_r//8, 8, 128); summing the leading (untiled) axis is
        # plain vreg-wise VPU adds -- no XLU reduce tree, no sub-lane masked store.
        acc_ref[...] += vals.reshape(tile_r // SUBLANES, SUBLANES, LANES).sum(axis=0)

    @pl.when(block_end <= n)        # interior block: every element is valid
    def _():
        accumulate(v)

    @pl.when(block_end > n)         # tail / phantom block: mask out-of-range elements
    def _():
        row = lax.broadcasted_iota(jnp.int32, (tile_r, LANES), 0)
        lane = lax.broadcasted_iota(jnp.int32, (tile_r, LANES), 1)
        idx = base + row * LANES + lane
        accumulate(jnp.where(idx < n, v, jnp.float32(0.0)))


def charbonnier_loss(x, y, eps=1e-3):
    assert x.shape == y.shape, "x and y must have identical shapes"
    n = x.size
    # TODO(synk): int32 flat indexing limits n to < 2**31 elements.

    xf = jnp.ravel(x)
    yf = jnp.ravel(y)

    # Pad only up to the next multiple of LANES (<= 127 elements) so the 2-D reshape is
    # legal; the in-kernel mask ignores pad values, so no correction term is needed.
    rem = (-n) % LANES
    if rem:
        xf = jnp.pad(xf, (0, rem))
        yf = jnp.pad(yf, (0, rem))
    rows = (n + rem) // LANES
    x2d = xf.reshape(rows, LANES)
    y2d = yf.reshape(rows, LANES)

    # Pick the biggest block that fits (capped at 1 MiB f32), rounded to the sublane tile.
    tile_r = max(SUBLANES, min(MAX_TILE_R, pl.cdiv(rows, SUBLANES) * SUBLANES))
    total_blocks = pl.cdiv(rows, tile_r)
    num_splits = min(NUM_CORE_SPLITS, total_blocks)
    steps_per_core = pl.cdiv(total_blocks, num_splits)
    last_block = total_blocks - 1

    def in_map(c, i, n_ref):
        # Clamp so phantom steps (blocks not dividing evenly across cores) re-read the
        # last real block instead of going out of bounds; the in-kernel mask zeroes
        # their contribution because their logical element range is entirely >= n.
        return (jnp.minimum(c * steps_per_core + i, last_block), 0)

    def out_map(c, i, n_ref):
        return (c, 0)

    partials = pl.pallas_call(
        functools.partial(
            _charbonnier_kernel,
            eps2=float(eps) * float(eps),
            tile_r=tile_r,
            steps_per_core=steps_per_core,
        ),
        out_shape=jax.ShapeDtypeStruct((num_splits * SUBLANES, LANES), jnp.float32),
        grid_spec=pltpu.PrefetchScalarGridSpec(
            num_scalar_prefetch=1,
            grid=(num_splits, steps_per_core),
            in_specs=[
                pl.BlockSpec((tile_r, LANES), in_map),
                pl.BlockSpec((tile_r, LANES), in_map),
            ],
            out_specs=pl.BlockSpec((SUBLANES, LANES), out_map),
        ),
        compiler_params=pltpu.CompilerParams(
            dimension_semantics=("parallel", "arbitrary"),
        ),
    )(jnp.array([n], dtype=jnp.int32), x2d, y2d)

    # Single cross-lane/cross-core reduce + exact mean.
    return jnp.sum(partials) / jnp.float32(n)


if __name__ == "__main__":
    key = jax.random.PRNGKey(0)
    eps = 1e-3

    def ref_loss(a, b):
        d = a.astype(jnp.float32) - b.astype(jnp.float32)
        return jnp.mean(jnp.sqrt(d * d + jnp.float32(eps) * jnp.float32(eps)))

    k1, k2, k3, k4, k5, k6 = jax.random.split(key, 6)

    # 1) NCHW shape from the module spec (exercises a single exactly-full block).
    x1 = jax.random.normal(k1, (2, 4, 16, 16), dtype=jnp.float32)
    y1 = jax.random.normal(k2, (2, 4, 16, 16), dtype=jnp.float32)
    out1 = jax.block_until_ready(charbonnier_loss(x1, y1, eps=eps))
    assert jnp.allclose(out1, ref_loss(x1, y1), rtol=1e-5, atol=1e-6), (out1, ref_loss(x1, y1))

    # 2) Exactly two full 1 MiB blocks -> exercises the full-block path + 2-way core split.
    x2 = jax.random.normal(k3, (4, 8, 128, 128), dtype=jnp.float32)
    y2 = jax.random.normal(k4, (4, 8, 128, 128), dtype=jnp.float32)
    out2 = jax.block_until_ready(charbonnier_loss(x2, y2, eps=eps))
    assert jnp.allclose(out2, ref_loss(x2, y2), rtol=5e-5, atol=1e-6), (out2, ref_loss(x2, y2))

    # 3) Odd size + bf16 inputs (kept narrow through HBM, upcast in-kernel, masked tail).
    x3 = jax.random.normal(k5, (2, 3, 11, 13), dtype=jnp.bfloat16)
    y3 = jax.random.normal(k6, (2, 3, 11, 13), dtype=jnp.bfloat16)
    out3 = jax.block_until_ready(charbonnier_loss(x3, y3, eps=eps))
    assert jnp.allclose(out3, ref_loss(x3, y3), rtol=1e-4, atol=1e-6), (out3, ref_loss(x3, y3))

    print("KERNEL_OK")
</pallas_src>

<mosaic_0001>
module attributes {stable_mosaic.version = 11 : i64} {
  func.func @_charbonnier_kernel(%arg0: i32, %arg1: i32, %arg2: memref<1xi32, #tpu.memory_space<smem>>, %arg3: memref<16x128xf32, #tpu.memory_space<vmem>>, %arg4: memref<16x128xf32, #tpu.memory_space<vmem>>, %arg5: memref<8x128xf32, #tpu.memory_space<vmem>>) attributes {dimension_semantics = [#tpu.dimension_semantics<parallel>, #tpu.dimension_semantics<arbitrary>], iteration_bounds = array<i64: 1, 1>, scalar_prefetch = 1 : i64, scratch_operands = 0 : i64, tpu.core_type = #tpu.core_type<tc>, window_params = [{transform_indices = @transform_0, window_bounds = array<i64: 16, 128>}, {transform_indices = @transform_1, window_bounds = array<i64: 16, 128>}, {transform_indices = @transform_2, window_bounds = array<i64: 8, 128>}]} {
    %c0_i32 = arith.constant 0 : i32
    %0 = arith.cmpi eq, %arg1, %c0_i32 : i32
    %1 = arith.extui %0 : i1 to i32
    %c0_i32_0 = arith.constant 0 : i32
    %2 = arith.cmpi ne, %1, %c0_i32_0 : i32
    scf.if %2 {
      %cst_8 = arith.constant 0.000000e+00 : f32
      %21 = vector.broadcast %cst_8 : f32 to vector<8x128xf32>
      %c0_9 = arith.constant 0 : index
      %c0_10 = arith.constant 0 : index
      %22 = vector.load %arg5[%c0_9, %c0_10] : memref<8x128xf32, #tpu.memory_space<vmem>>, vector<8x128xf32>
      tpu.vector_store %arg5[%c0_9, %c0_10], %21 {strides = array<i32>} : memref<8x128xf32, #tpu.memory_space<vmem>>, vector<8x128xf32>,
    } else {
    }
    %c0 = arith.constant 0 : index
    %3 = memref.load %arg2[%c0] : memref<1xi32, #tpu.memory_space<smem>>
    %c1_i32 = arith.constant 1 : i32
    %4 = arith.muli %arg0, %c1_i32 : i32
    %5 = arith.addi %4, %arg1 : i32
    %c2048_i32 = arith.constant 2048 : i32
    %6 = arith.muli %5, %c2048_i32 : i32
    %c2048_i32_1 = arith.constant 2048 : i32
    %7 = arith.addi %6, %c2048_i32_1 : i32
    %c0_2 = arith.constant 0 : index
    %c0_3 = arith.constant 0 : index
    %8 = vector.load %arg3[%c0_2, %c0_3] : memref<16x128xf32, #tpu.memory_space<vmem>>, vector<16x128xf32>
    %c0_4 = arith.constant 0 : index
    %c0_5 = arith.constant 0 : index
    %9 = vector.load %arg4[%c0_4, %c0_5] : memref<16x128xf32, #tpu.memory_space<vmem>>, vector<16x128xf32>
    %10 = arith.subf %8, %9 : vector<16x128xf32>
    %11 = arith.mulf %10, %10 : vector<16x128xf32>
    %cst = arith.constant 9.99999997E-7 : f32
    %12 = vector.broadcast %cst : f32 to vector<16x128xf32>
    %13 = arith.addf %11, %12 : vector<16x128xf32>
    %14 = math.sqrt %13 : vector<16x128xf32>
    %15 = arith.cmpi sle, %7, %3 : i32
    %16 = arith.extui %15 : i1 to i32
    %c0_i32_6 = arith.constant 0 : i32
    %17 = arith.cmpi ne, %16, %c0_i32_6 : i32
    scf.if %17 {
      %c0_8 = arith.constant 0 : index
      %c0_9 = arith.constant 0 : index
      %21 = vector.load %arg5[%c0_8, %c0_9] : memref<8x128xf32, #tpu.memory_space<vmem>>, vector<8x128xf32>
      %22 = vector.shape_cast %14 : vector<16x128xf32> to vector<2x8x128xf32>
      %cst_10 = arith.constant dense<0.000000e+00> : vector<8x128xf32>
      %23 = vector.multi_reduction <add>, %22, %cst_10 [0] : vector<2x8x128xf32> to vector<8x128xf32>
      %24 = arith.addf %21, %23 : vector<8x128xf32>
      %c0_11 = arith.constant 0 : index
      %c0_12 = arith.constant 0 : index
      %25 = vector.load %arg5[%c0_11, %c0_12] : memref<8x128xf32, #tpu.memory_space<vmem>>, vector<8x128xf32>
      tpu.vector_store %arg5[%c0_11, %c0_12], %24 {strides = array<i32>} : memref<8x128xf32, #tpu.memory_space<vmem>>, vector<8x128xf32>,
    } else {
    }
    %18 = arith.cmpi sgt, %7, %3 : i32
    %19 = arith.extui %18 : i1 to i32
    %c0_i32_7 = arith.constant 0 : i32
    %20 = arith.cmpi ne, %19, %c0_i32_7 : i32
    scf.if %20 {
      %21 = tpu.iota {dimensions = array<i32: 0>} : vector<16x128xi32>
      %22 = tpu.iota {dimensions = array<i32: 1>} : vector<16x128xi32>
      %c128_i32 = arith.constant 128 : i32
      %23 = vector.broadcast %c128_i32 : i32 to vector<16x128xi32>
      %24 = arith.muli %21, %23 : vector<16x128xi32>
      %25 = vector.broadcast %6 : i32 to vector<16x128xi32>
      %26 = arith.addi %25, %24 : vector<16x128xi32>
      %27 = arith.addi %26, %22 : vector<16x128xi32>
      %28 = vector.broadcast %3 : i32 to vector<16x128xi32>
      %29 = arith.cmpi slt, %27, %28 : vector<16x128xi32>
      %cst_8 = arith.constant 0.000000e+00 : f32
      %30 = vector.broadcast %cst_8 : f32 to vector<16x128xf32>
      %31 = arith.select %29, %14, %30 : vector<16x128xi1>, vector<16x128xf32>
      %c0_9 = arith.constant 0 : index
      %c0_10 = arith.constant 0 : index
      %32 = vector.load %arg5[%c0_9, %c0_10] : memref<8x128xf32, #tpu.memory_space<vmem>>, vector<8x128xf32>
      %33 = vector.shape_cast %31 : vector<16x128xf32> to vector<2x8x128xf32>
      %cst_11 = arith.constant dense<0.000000e+00> : vector<8x128xf32>
      %34 = vector.multi_reduction <add>, %33, %cst_11 [0] : vector<2x8x128xf32> to vector<8x128xf32>
      %35 = arith.addf %32, %34 : vector<8x128xf32>
      %c0_12 = arith.constant 0 : index
      %c0_13 = arith.constant 0 : index
      %36 = vector.load %arg5[%c0_12, %c0_13] : memref<8x128xf32, #tpu.memory_space<vmem>>, vector<8x128xf32>
      tpu.vector_store %arg5[%c0_12, %c0_13], %35 {strides = array<i32>} : memref<8x128xf32, #tpu.memory_space<vmem>>, vector<8x128xf32>,
    } else {
    }
    return
  }
  func.func @transform_0(%arg0: i32, %arg1: i32, %arg2: memref<1xi32, #tpu.memory_space<smem>>) -> (i32, i32) {
    %c1_i32 = arith.constant 1 : i32
    %0 = arith.muli %arg0, %c1_i32 : i32
    %1 = arith.addi %0, %arg1 : i32
    %c0_i32 = arith.constant 0 : i32
    %2 = arith.minsi %1, %c0_i32 : i32
    %c0_i32_0 = arith.constant 0 : i32
    %c0_i32_1 = arith.constant 0 : i32
    return %2, %c0_i32_0 : i32, i32
  }
  func.func @transform_1(%arg0: i32, %arg1: i32, %arg2: memref<1xi32, #tpu.memory_space<smem>>) -> (i32, i32) {
    %c1_i32 = arith.constant 1 : i32
    %0 = arith.muli %arg0, %c1_i32 : i32
    %1 = arith.addi %0, %arg1 : i32
    %c0_i32 = arith.constant 0 : i32
    %2 = arith.minsi %1, %c0_i32 : i32
    %c0_i32_0 = arith.constant 0 : i32
    %c0_i32_1 = arith.constant 0 : i32
    return %2, %c0_i32_0 : i32, i32
  }
  func.func @transform_2(%arg0: i32, %arg1: i32, %arg2: memref<1xi32, #tpu.memory_space<smem>>) -> (i32, i32) {
    %c0_i32 = arith.constant 0 : i32
    %c0_i32_0 = arith.constant 0 : i32
    return %arg0, %c0_i32 : i32, i32
  }
}

</mosaic_0001>

<llo_original>
// kernel: tpu_custom_call.1
$region0: #{tpu_custom_call.1}
  #allocation0 [shape = 'u32[]', space=smem, size = 0x4, offset = 0x4, fixed_abs, tag = 'smem constant byte address 0x4 - core index']
  #allocation1 [shape = 'u32[72,128]{1,0:T(1,128)}', space=vmem, size = 0x9000, scoped, tag = 'internal scratch']
  #allocation2 [shape = 's32[1]{0}', space=sflag, size = 0x4, scoped, tag = 'scoped memory for tpu_custom_call.1']
  #allocation3 [shape = 's32[1]{0:T(128)S(6)}', space=smem, size = 0x200, scoped, tag = 'prefetched SMEM operand 0']
  %s0 = inlined_call_operand.<no memory space> [shape: s32[1], index: 0, kind: input, shape index: {}]
  %s1 = inlined_call_operand.hbm [shape: f32[16,128], index: 1, kind: input, shape index: {}]
  %s2 = inlined_call_operand.hbm [shape: f32[16,128], index: 2, kind: input, shape index: {}]
  %s3 = inlined_call_operand.hbm [shape: f32[8,128], index: 3, kind: output, shape index: {}]
  %s4 = sld [smem:[#allocation0]]
  $region38: #{tpu_custom_call.1} parent=0
    _
  %s6 = ssub.s32 1, %s4
  %s7 = scalar_select 0, %s6, %s4
  %8 = sst [smem:[#allocation3]] %s0
  $region1: #{tpu_custom_call.1} parent=0
    #allocation4 [shape = 'u8[8192]{0}', space=vmem, size = 0x2000, scoped, tag = 'input window, operand 1, single buffered']
    #allocation5 [shape = 's32[1]{0}', space=sflag, size = 0x4, scoped, tag = 'scoped memory for tpu_custom_call.1']
    #allocation6 [shape = 's32[1]{0}', space=sflag, size = 0x4, scoped, tag = 'scoped memory for tpu_custom_call.1']
    #allocation7 [shape = 'u8[8192]{0}', space=vmem, size = 0x2000, scoped, tag = 'input window, operand 2, single buffered']
    #allocation8 [shape = 's32[1]{0}', space=sflag, size = 0x4, scoped, tag = 'scoped memory for tpu_custom_call.1']
    #allocation9 [shape = 'u8[4096]{0}', space=vmem, size = 0x1000, scoped, tag = 'output window, operand 0, single buffered']
    %9 = vsyncpa [#allocation5], 0
    %10 = vsyncpa [#allocation8], 0
    %11 = vsyncpa [#allocation6], 0
    // Predicated region
    $region2: #{tpu_custom_call.1} parent=1 // pred_check
      _
    $region3: #{tpu_custom_call.1} parent=1 // pred_check_branch
      %13 = sbr.rel (0) target = $region5
    $region4: #{tpu_custom_call.1} parent=1 // pred_region
      %s14 = sadd.s32 0, 0
      %p15 = scmp.lt.s32.totalorder %s14, 0
      %s16 = scalar_select %p15, %s14, 0
      %s17 = smul.u32 2, %s16
      %19 = vsyncadd [#allocation5], 0
      %s20 = smul.addr %s17, 8
      %s21 = scalar_lea.hbm %s1, %s20
      %s22 = sshll.u32 %s21, 4
      %s23 = int_to_ptr.hbm [resolvable:$true] %s22
      %s24 = sshll.u32 [#allocation4], 4
      %s25 = int_to_ptr.vmem [resolvable:$true] %s24
      %30 = dma.hbm_to_vmem [thread:$0]  %s23, 256, %s25, [#allocation5], 128, 128, 8
    $region5: #{tpu_custom_call.1} parent=1 // pred_fallthru
      _
    // Predicated region
    $region6: #{tpu_custom_call.1} parent=1 // pred_check
      _
    $region7: #{tpu_custom_call.1} parent=1 // pred_check_branch
      %32 = sbr.rel (0) target = $region9
    $region8: #{tpu_custom_call.1} parent=1 // pred_region
      %s33 = sadd.s32 0, 0
      %p34 = scmp.lt.s32.totalorder %s33, 0
      %s35 = scalar_select %p34, %s33, 0
      %s36 = smul.u32 2, %s35
      %38 = vsyncadd [#allocation8], 0
      %s39 = smul.addr %s36, 8
      %s40 = scalar_lea.hbm %s2, %s39
      %s41 = sshll.u32 %s40, 4
      %s42 = int_to_ptr.hbm [resolvable:$true] %s41
      %s43 = sshll.u32 [#allocation7], 4
      %s44 = int_to_ptr.vmem [resolvable:$true] %s43
      %49 = dma.hbm_to_vmem [thread:$0]  %s42, 256, %s44, [#allocation8], 128, 128, 8
    $region9: #{tpu_custom_call.1} parent=1 // pred_fallthru
      _
    // Predicated region
    $region10: #{tpu_custom_call.1} parent=1 // pred_check
      _
    $region11: #{tpu_custom_call.1} parent=1 // pred_check_branch
      %51 = sbr.rel (0) target = $region13
    $region12: #{tpu_custom_call.1} parent=1 // pred_region
      %53 = dma.done [#allocation5], 256
    $region13: #{tpu_custom_call.1} parent=1 // pred_fallthru
      _
    // Predicated region
    $region14: #{tpu_custom_call.1} parent=1 // pred_check
      _
    $region15: #{tpu_custom_call.1} parent=1 // pred_check_branch
      %55 = sbr.rel (0) target = $region17
    $region16: #{tpu_custom_call.1} parent=1 // pred_region
      %57 = dma.done [#allocation8], 256
    $region17: #{tpu_custom_call.1} parent=1 // pred_fallthru
      _
    %s58 = sadd.s32 0, 0
    %p59 = scmp.lt.s32.totalorder %s58, 0
    %s60 = scalar_select %p59, %s58, 0
    %s61 = smul.u32 2, %s60
    %s62 = sadd.s32 0, 0
    %p63 = scmp.lt.s32.totalorder %s62, 0
    %s64 = scalar_select %p63, %s62, 0
    %s65 = smul.u32 2, %s64
    %p66 = scmp.eq.s32.totalorder 0, 0
    // Predicated region
    $region18: #{tpu_custom_call.1} parent=1 // pred_check
      %p67 = pneg %p66
    $region19: #{tpu_custom_call.1} parent=1 // pred_check_branch
      %69 = sbr.rel (%p67) target = $region21
    $region20: #{tpu_custom_call.1} parent=1 // pred_region
      %70 = vst [vmem:[#allocation9] sm:$0xff] 0.0
    $region21: #{tpu_custom_call.1} parent=1 // pred_fallthru
      _
    %s71 = sld [smem:[#allocation3]]
    %s72 = sadd.s32 0, 0
    %s73 = smul.u32 %s72, 2048
    %s74 = sadd.s32 %s73, 2048
    %v75 = vld [vmem:[#allocation4] sm:$0xff]
    %v76 = vld [vmem:[#allocation4 + $0x8] sm:$0xff]
    %v77 = vld [vmem:[#allocation7] sm:$0xff]
    %v78 = vld [vmem:[#allocation7 + $0x8] sm:$0xff]
    %v79 = vsub.f32 %v75, %v77
    %v80 = vsub.f32 %v76, %v78
    %v81 = vmul.f32 %v79, %v79
    %v82 = vmul.f32 %v80, %v80
    %v83 = vadd.f32 %v81, 1e-06
    %v84 = vadd.f32 %v82, 1e-06
    %v85 = vrsqrt.pop %v83
    %v86 = vmul.f32 %v85, %v83
    %v87 = vmul.f32 %v86, %v85
    %v88 = vmul.f32 0.5, %v87
    %v89 = vsub.f32 1.5, %v88
    %v90 = vmul.f32 %v85, %v89
    %v91 = vmul.f32 %v83, %v90
    %vm92 = vcmp.eq.f32.partialorder %v83, inf
    %v93 = vsel %vm92, %v83, %v91
    %vm94 = vcmp.eq.f32.partialorder %v83, 0.0
    %v95 = vand.u32 %v83, 2147483648
    %v96 = vsel %vm94, %v95, %v93
    %v97 = vrsqrt.pop %v84
    %v98 = vmul.f32 %v97, %v84
    %v99 = vmul.f32 %v98, %v97
    %v100 = vmul.f32 0.5, %v99
    %v101 = vsub.f32 1.5, %v100
    %v102 = vmul.f32 %v97, %v101
    %v103 = vmul.f32 %v84, %v102
    %vm104 = vcmp.eq.f32.partialorder %v84, inf
    %v105 = vsel %vm104, %v84, %v103
    %vm106 = vcmp.eq.f32.partialorder %v84, 0.0
    %v107 = vand.u32 %v84, 2147483648
    %v108 = vsel %vm106, %v107, %v105
    %p109 = scmp.le.s32.totalorder %s74, %s71
    // Predicated region
    $region22: #{tpu_custom_call.1} parent=1 // pred_check
      %p110 = pneg %p109
    $region23: #{tpu_custom_call.1} parent=1 // pred_check_branch
      %112 = sbr.rel (%p110) target = $region25
    $region24: #{tpu_custom_call.1} parent=1 // pred_region
      %v113 = vld [vmem:[#allocation9] sm:$0xff]
      %v114 = vadd.f32 %v96, %v108
      %v115 = vadd.f32 %v113, %v114
      %116 = vst [vmem:[#allocation9] sm:$0xff] %v115
    $region25: #{tpu_custom_call.1} parent=1 // pred_fallthru
      _
    %p117 = scmp.gt.s32.totalorder %s74, %s71
    // Predicated region
    $region26: #{tpu_custom_call.1} parent=1 // pred_check
      %p118 = pneg %p117
    $region27: #{tpu_custom_call.1} parent=1 // pred_check_branch
      %120 = sbr.rel (%p118) target = $region29
    $region28: #{tpu_custom_call.1} parent=1 // pred_region
      %v121 = vlaneseq
      %v122 = vshrl.u32 %v121, 7
      %v123 = vadd.s32 %v122, 8
      %v124 = vlaneseq
      %v125 = vand.u32 %v124, 127
      %v126 = vmul.u32 %v122, 128
      %v127 = vmul.u32 %v123, 128
      %v128 = vstv %s73
      %v129 = vadd.s32 %v128, %v126
      %v130 = vadd.s32 %v128, %v127
      %v131 = vadd.s32 %v129, %v125
      %v132 = vadd.s32 %v130, %v125
      %v133 = vstv %s71
      %vm134 = vcmp.lt.s32.totalorder %v131, %v133
      %vm135 = vcmp.lt.s32.totalorder %v132, %v133
      %v136 = vsel %vm134, %v96, 0.0
      %v137 = vsel %vm135, %v108, 0.0
      %v138 = vld [vmem:[#allocation9] sm:$0xff]
      %v139 = vadd.f32 %v136, %v137
      %v140 = vadd.f32 %v138, %v139
      %141 = vst [vmem:[#allocation9] sm:$0xff] %v140
    $region29: #{tpu_custom_call.1} parent=1 // pred_fallthru
      _
    // Predicated region
    $region30: #{tpu_custom_call.1} parent=1 // pred_check
      _
    $region31: #{tpu_custom_call.1} parent=1 // pred_check_branch
      %143 = sbr.rel (0) target = $region33
    $region32: #{tpu_custom_call.1} parent=1 // pred_region
      %145 = vsyncadd [#allocation6], 0
      %s147 = sshll.u32 [#allocation9], 4
      %s148 = int_to_ptr.vmem [resolvable:$true] %s147
      %s149 = sshll.u32 %s3, 4
      %s150 = int_to_ptr.hbm [resolvable:$true] %s149
      %152 = dma.vmem_to_hbm [thread:$0]  %s148, 128, %s150, [#allocation6]
    $region33: #{tpu_custom_call.1} parent=1 // pred_fallthru
      _
    // Predicated region
    $region34: #{tpu_custom_call.1} parent=1 // pred_check
      _
    $region35: #{tpu_custom_call.1} parent=1 // pred_check_branch
      %154 = sbr.rel (0) target = $region37
    $region36: #{tpu_custom_call.1} parent=1 // pred_region
      %156 = dma.done [#allocation6], 128
    $region37: #{tpu_custom_call.1} parent=1 // pred_fallthru
      _
    %157 = vsyncpa [#allocation5], 1
    %158 = vsyncpa [#allocation8], 1
    %159 = vsyncpa [#allocation6], 1

</llo_original>
